<compile_context>
chip_gen: v6e
topology: v6e:2x2x1
jax: 0.10.0
libtpu: 0.0.40
codegen_flags: <defaults>
</compile_context>

<pallas_src>
import functools

import jax
import jax.numpy as jnp
from jax import lax
from jax.experimental import pallas as pl
from jax.experimental.pallas import tpu as pltpu

_LANES = 128


def _round_up(x, m):
    return ((x + m - 1) // m) * m


def _mape_partial_kernel(p_ref, a_ref, out_ref, acc_ref, *,
                         block_rows, valid_rows, need_mask):
    j = pl.program_id(1)

    @pl.when(j == 0)
    def _():
        acc_ref[...] = jnp.zeros_like(acc_ref)

    p = p_ref[...].astype(jnp.float32)
    a = a_ref[...].astype(jnp.float32)

    if need_mask:
        # Logical (unclamped) block index -> global row ids covered by this tile.
        blk = pl.program_id(0) * pl.num_programs(1) + j
        row0 = blk * block_rows
        row_ids = row0 + lax.broadcasted_iota(jnp.int32, (block_rows, _LANES), 0)
        valid = row_ids < valid_rows
        # Out-of-range rows (Pallas edge padding / clamped duplicate blocks) are
        # forced to 1.0, which contributes exactly 0 to the numerator.
        p = jnp.where(valid, p, 1.0)
        a = jnp.where(valid, a, 1.0)

    # torch.clamp(x, min=1)
    p = jnp.maximum(p, 1.0)
    a = jnp.maximum(a, 1.0)
    # |log2(a+1) - log2(p+1)| / log2(a+2)
    # TODO(synk): on v7x (EUP-bound) this chain could be trimmed with
    # pl.reciprocal(..., approx=True); kept exact to preserve reference numerics.
    diff = jnp.abs(jnp.log2(a + 1.0) - jnp.log2(p + 1.0)) / jnp.log2(a + 2.0)

    # Lane/sublane-dense partial sum: fold (block_rows,128) -> (8,128) with pure
    # element-wise vreg adds (VPU only), keeping the loop-carried accumulator
    # dense and off the XLU.
    acc_ref[...] += jnp.sum(diff.reshape(block_rows // 8, 8, _LANES), axis=0)

    @pl.when(j == pl.num_programs(1) - 1)
    def _():
        out_ref[0] = acc_ref[...]


def mape_loss(pred, actual, *, block_rows=1024, num_parallel=2):
    assert pred.shape == actual.shape
    n_elems = pred.size

    p_flat = jnp.ravel(pred)
    a_flat = jnp.ravel(actual)

    # Only a (<128-element) tail of the last lane-row ever needs padding; pad
    # value 1.0 contributes exactly 0.  When numel % 128 == 0 (common case, and
    # the case below) this is skipped and the reshape is copy-free.
    rem = n_elems % _LANES
    if rem:
        pad = _LANES - rem
        p_flat = jnp.concatenate([p_flat, jnp.ones((pad,), p_flat.dtype)])
        a_flat = jnp.concatenate([a_flat, jnp.ones((pad,), a_flat.dtype)])

    rows = p_flat.shape[0] // _LANES
    p2 = p_flat.reshape(rows, _LANES)
    a2 = a_flat.reshape(rows, _LANES)

    # Tile rows: multiple of 8, capped so we never massively exceed the array.
    br = max(8, min(_round_up(block_rows, 8), _round_up(rows, 8)))
    steps = pl.cdiv(rows, br)                  # row-blocks containing real data
    n_par = max(1, min(num_parallel, steps))   # leading "parallel" axis (v7x 2xTC)
    steps_per_par = pl.cdiv(steps, n_par)
    need_mask = (n_par * steps_per_par * br) != rows

    def in_index_map(pi, ji):
        # Clamp so trailing (fully masked) logical blocks never DMA out of bounds.
        return (jnp.minimum(pi * steps_per_par + ji, steps - 1), 0)

    kernel = functools.partial(
        _mape_partial_kernel,
        block_rows=br, valid_rows=rows, need_mask=need_mask)

    partials = pl.pallas_call(
        kernel,
        out_shape=jax.ShapeDtypeStruct((n_par, 8, _LANES), jnp.float32),
        grid_spec=pltpu.PrefetchScalarGridSpec(
            num_scalar_prefetch=0,
            grid=(n_par, steps_per_par),
            in_specs=[
                pl.BlockSpec((br, _LANES), in_index_map),
                pl.BlockSpec((br, _LANES), in_index_map),
            ],
            out_specs=pl.BlockSpec((1, 8, _LANES), lambda pi, ji: (pi, 0, 0)),
            scratch_shapes=[pltpu.VMEM((8, _LANES), jnp.float32)],
        ),
        compiler_params=pltpu.CompilerParams(
            dimension_semantics=("parallel", "arbitrary"),
        ),
    )(p2, a2)

    total = jnp.sum(partials)
    return (total / jnp.float32(n_elems)).astype(jnp.float32)


def _reference(pred, actual):
    p = jnp.maximum(pred.astype(jnp.float32), 1.0)
    a = jnp.maximum(actual.astype(jnp.float32), 1.0)
    diff = jnp.abs(jnp.log2(a + 1.0) - jnp.log2(p + 1.0)) / jnp.log2(a + 2.0)
    return jnp.mean(diff)


if __name__ == "__main__":
    key = jax.random.PRNGKey(0)
    k1, k2 = jax.random.split(key)
    # Small NCHW-like shapes; values span below/above the clamp threshold of 1.
    shape = (2, 4, 16, 16)
    pred = jax.random.uniform(k1, shape, jnp.float32, minval=0.0, maxval=10.0)
    actual = jax.random.uniform(k2, shape, jnp.float32, minval=0.0, maxval=10.0)

    loss = jax.block_until_ready(mape_loss(pred, actual))
    ref = jax.block_until_ready(_reference(pred, actual))

    assert jnp.allclose(loss, ref, rtol=1e-5, atol=1e-6), (loss, ref)
    print("KERNEL_OK")
</pallas_src>

<mosaic_0001>
module attributes {stable_mosaic.version = 11 : i64} {
  func.func @_mape_partial_kernel(%arg0: i32, %arg1: i32, %arg2: memref<16x128xf32, #tpu.memory_space<vmem>>, %arg3: memref<16x128xf32, #tpu.memory_space<vmem>>, %arg4: memref<1x8x128xf32, #tpu.memory_space<vmem>>, %arg5: memref<8x128xf32, #tpu.memory_space<vmem>>) attributes {dimension_semantics = [#tpu.dimension_semantics<parallel>, #tpu.dimension_semantics<arbitrary>], iteration_bounds = array<i64: 1, 1>, scalar_prefetch = 0 : i64, scratch_operands = 1 : i64, tpu.core_type = #tpu.core_type<tc>, window_params = [{transform_indices = @transform_0, window_bounds = array<i64: 16, 128>}, {transform_indices = @transform_1, window_bounds = array<i64: 16, 128>}, {transform_indices = @transform_2, window_bounds = array<i64: 1, 8, 128>}]} {
    %c0_i32 = arith.constant 0 : i32
    %0 = arith.cmpi eq, %arg1, %c0_i32 : i32
    %1 = arith.extui %0 : i1 to i32
    %c0_i32_0 = arith.constant 0 : i32
    %2 = arith.cmpi ne, %1, %c0_i32_0 : i32
    scf.if %2 {
      %cst_18 = arith.constant 0.000000e+00 : f32
      %38 = vector.broadcast %cst_18 : f32 to vector<8x128xf32>
      %c0_19 = arith.constant 0 : index
      %c0_20 = arith.constant 0 : index
      %39 = vector.load %arg5[%c0_19, %c0_20] : memref<8x128xf32, #tpu.memory_space<vmem>>, vector<8x128xf32>
      tpu.vector_store %arg5[%c0_19, %c0_20], %38 {strides = array<i32>} : memref<8x128xf32, #tpu.memory_space<vmem>>, vector<8x128xf32>,
    } else {
    }
    %c0 = arith.constant 0 : index
    %c0_1 = arith.constant 0 : index
    %3 = vector.load %arg2[%c0, %c0_1] : memref<16x128xf32, #tpu.memory_space<vmem>>, vector<16x128xf32>
    %c0_2 = arith.constant 0 : index
    %c0_3 = arith.constant 0 : index
    %4 = vector.load %arg3[%c0_2, %c0_3] : memref<16x128xf32, #tpu.memory_space<vmem>>, vector<16x128xf32>
    %cst = arith.constant 1.000000e+00 : f32
    %5 = vector.broadcast %cst : f32 to vector<16x128xf32>
    %6 = arith.maximumf %3, %5 : vector<16x128xf32>
    %cst_4 = arith.constant 1.000000e+00 : f32
    %7 = vector.broadcast %cst_4 : f32 to vector<16x128xf32>
    %8 = arith.maximumf %4, %7 : vector<16x128xf32>
    %cst_5 = arith.constant 1.000000e+00 : f32
    %9 = vector.broadcast %cst_5 : f32 to vector<16x128xf32>
    %10 = arith.addf %8, %9 : vector<16x128xf32>
    %11 = math.log %10 : vector<16x128xf32>
    %cst_6 = arith.constant 2.000000e+00 : f32
    %12 = math.log %cst_6 : f32
    %13 = vector.broadcast %12 : f32 to vector<16x128xf32>
    %14 = arith.divf %11, %13 : vector<16x128xf32>
    %cst_7 = arith.constant 1.000000e+00 : f32
    %15 = vector.broadcast %cst_7 : f32 to vector<16x128xf32>
    %16 = arith.addf %6, %15 : vector<16x128xf32>
    %17 = math.log %16 : vector<16x128xf32>
    %cst_8 = arith.constant 2.000000e+00 : f32
    %18 = math.log %cst_8 : f32
    %19 = vector.broadcast %18 : f32 to vector<16x128xf32>
    %20 = arith.divf %17, %19 : vector<16x128xf32>
    %21 = arith.subf %14, %20 : vector<16x128xf32>
    %22 = math.absf %21 : vector<16x128xf32>
    %cst_9 = arith.constant 2.000000e+00 : f32
    %23 = vector.broadcast %cst_9 : f32 to vector<16x128xf32>
    %24 = arith.addf %8, %23 : vector<16x128xf32>
    %25 = math.log %24 : vector<16x128xf32>
    %cst_10 = arith.constant 2.000000e+00 : f32
    %26 = math.log %cst_10 : f32
    %27 = vector.broadcast %26 : f32 to vector<16x128xf32>
    %28 = arith.divf %25, %27 : vector<16x128xf32>
    %29 = arith.divf %22, %28 : vector<16x128xf32>
    %c0_11 = arith.constant 0 : index
    %c0_12 = arith.constant 0 : index
    %30 = vector.load %arg5[%c0_11, %c0_12] : memref<8x128xf32, #tpu.memory_space<vmem>>, vector<8x128xf32>
    %31 = vector.shape_cast %29 : vector<16x128xf32> to vector<2x8x128xf32>
    %cst_13 = arith.constant dense<0.000000e+00> : vector<8x128xf32>
    %32 = vector.multi_reduction <add>, %31, %cst_13 [0] : vector<2x8x128xf32> to vector<8x128xf32>
    %33 = arith.addf %30, %32 : vector<8x128xf32>
    %c0_14 = arith.constant 0 : index
    %c0_15 = arith.constant 0 : index
    %34 = vector.load %arg5[%c0_14, %c0_15] : memref<8x128xf32, #tpu.memory_space<vmem>>, vector<8x128xf32>
    tpu.vector_store %arg5[%c0_14, %c0_15], %33 {strides = array<i32>} : memref<8x128xf32, #tpu.memory_space<vmem>>, vector<8x128xf32>,
    %c0_i32_16 = arith.constant 0 : i32
    %35 = arith.cmpi eq, %arg1, %c0_i32_16 : i32
    %36 = arith.extui %35 : i1 to i32
    %c0_i32_17 = arith.constant 0 : i32
    %37 = arith.cmpi ne, %36, %c0_i32_17 : i32
    scf.if %37 {
      %c0_18 = arith.constant 0 : index
      %c0_19 = arith.constant 0 : index
      %38 = vector.load %arg5[%c0_18, %c0_19] : memref<8x128xf32, #tpu.memory_space<vmem>>, vector<8x128xf32>
      %c0_20 = arith.constant 0 : index
      %c0_21 = arith.constant 0 : index
      %c0_22 = arith.constant 0 : index
      %39 = vector.load %arg4[%c0_20, %c0_21, %c0_22] : memref<1x8x128xf32, #tpu.memory_space<vmem>>, vector<1x8x128xf32>
      %40 = vector.shape_cast %39 : vector<1x8x128xf32> to vector<8x128xf32>
      %41 = vector.shape_cast %38 : vector<8x128xf32> to vector<1x8x128xf32>
      tpu.vector_store %arg4[%c0_20, %c0_21, %c0_22], %41 {strides = array<i32>} : memref<1x8x128xf32, #tpu.memory_space<vmem>>, vector<1x8x128xf32>,
    } else {
    }
    return
  }
  func.func @transform_0(%arg0: i32, %arg1: i32) -> (i32, i32) {
    %c1_i32 = arith.constant 1 : i32
    %0 = arith.muli %arg0, %c1_i32 : i32
    %1 = arith.addi %0, %arg1 : i32
    %c0_i32 = arith.constant 0 : i32
    %2 = arith.minsi %1, %c0_i32 : i32
    %c0_i32_0 = arith.constant 0 : i32
    %c0_i32_1 = arith.constant 0 : i32
    return %2, %c0_i32_0 : i32, i32
  }
  func.func @transform_1(%arg0: i32, %arg1: i32) -> (i32, i32) {
    %c1_i32 = arith.constant 1 : i32
    %0 = arith.muli %arg0, %c1_i32 : i32
    %1 = arith.addi %0, %arg1 : i32
    %c0_i32 = arith.constant 0 : i32
    %2 = arith.minsi %1, %c0_i32 : i32
    %c0_i32_0 = arith.constant 0 : i32
    %c0_i32_1 = arith.constant 0 : i32
    return %2, %c0_i32_0 : i32, i32
  }
  func.func @transform_2(%arg0: i32, %arg1: i32) -> (i32, i32, i32) {
    %c0_i32 = arith.constant 0 : i32
    %c0_i32_0 = arith.constant 0 : i32
    %c0_i32_1 = arith.constant 0 : i32
    return %arg0, %c0_i32, %c0_i32_0 : i32, i32, i32
  }
}

</mosaic_0001>

<llo_original>
// kernel: tpu_custom_call.1
$region0: #{tpu_custom_call.1}
  #allocation0 [shape = 'u32[]', space=smem, size = 0x4, offset = 0x4, fixed_abs, tag = 'smem constant byte address 0x4 - core index']
  #allocation1 [shape = 'u32[144,128]{1,0:T(1,128)}', space=vmem, size = 0x12000, scoped, tag = 'internal scratch']
  #allocation2 [shape = 'f32[8,128]{1,0:T(8,128)}', space=vmem, size = 0x1000, scoped, tag = 'scratch operand']
  %s0 = inlined_call_operand.hbm [shape: f32[16,128], index: 0, kind: input, shape index: {}]
  %s1 = inlined_call_operand.hbm [shape: f32[16,128], index: 1, kind: input, shape index: {}]
  %s2 = inlined_call_operand.hbm [shape: f32[1,8,128], index: 2, kind: output, shape index: {}]
  %s3 = sld [smem:[#allocation0]]
  $region34: #{tpu_custom_call.1} parent=0
    _
  %s5 = ssub.s32 1, %s3
  %s6 = scalar_select 0, %s5, %s3
  $region1: #{tpu_custom_call.1} parent=0
    #allocation3 [shape = 'u8[8192]{0}', space=vmem, size = 0x2000, scoped, tag = 'input window, operand 0, single buffered']
    #allocation4 [shape = 's32[1]{0}', space=sflag, size = 0x4, scoped, tag = 'scoped memory for tpu_custom_call.1']
    #allocation5 [shape = 's32[1]{0}', space=sflag, size = 0x4, scoped, tag = 'scoped memory for tpu_custom_call.1']
    #allocation6 [shape = 'u8[8192]{0}', space=vmem, size = 0x2000, scoped, tag = 'input window, operand 1, single buffered']
    #allocation7 [shape = 's32[1]{0}', space=sflag, size = 0x4, scoped, tag = 'scoped memory for tpu_custom_call.1']
    #allocation8 [shape = 'u8[4096]{0}', space=vmem, size = 0x1000, scoped, tag = 'output window, operand 0, single buffered']
    %7 = vsyncpa [#allocation4], 0
    %8 = vsyncpa [#allocation7], 0
    %9 = vsyncpa [#allocation5], 0
    // Predicated region
    $region2: #{tpu_custom_call.1} parent=1 // pred_check
      _
    $region3: #{tpu_custom_call.1} parent=1 // pred_check_branch
      %11 = sbr.rel (0) target = $region5
    $region4: #{tpu_custom_call.1} parent=1 // pred_region
      %s12 = sadd.s32 0, 0
      %p13 = scmp.lt.s32.totalorder %s12, 0
      %s14 = scalar_select %p13, %s12, 0
      %s15 = smul.u32 2, %s14
      %s17 = ssub.s32 256, 256
      %18 = vsyncadd [#allocation4], %s17
      %s19 = smul.addr %s15, 128
      %s20 = scalar_lea.hbm %s0, %s19
      %s21 = sshll.u32 [#allocation3], 4
      %s22 = int_to_ptr.vmem [resolvable:$true] %s21
      %27 = dma.hbm_to_vmem [thread:$0]  %s20, 256, %s22, [#allocation4], 128, 128, 8
    $region5: #{tpu_custom_call.1} parent=1 // pred_fallthru
      _
    // Predicated region
    $region6: #{tpu_custom_call.1} parent=1 // pred_check
      _
    $region7: #{tpu_custom_call.1} parent=1 // pred_check_branch
      %29 = sbr.rel (0) target = $region9
    $region8: #{tpu_custom_call.1} parent=1 // pred_region
      %s30 = sadd.s32 0, 0
      %p31 = scmp.lt.s32.totalorder %s30, 0
      %s32 = scalar_select %p31, %s30, 0
      %s33 = smul.u32 2, %s32
      %s35 = ssub.s32 256, 256
      %36 = vsyncadd [#allocation7], %s35
      %s37 = smul.addr %s33, 128
      %s38 = scalar_lea.hbm %s1, %s37
      %s39 = sshll.u32 [#allocation6], 4
      %s40 = int_to_ptr.vmem [resolvable:$true] %s39
      %45 = dma.hbm_to_vmem [thread:$0]  %s38, 256, %s40, [#allocation7], 128, 128, 8
    $region9: #{tpu_custom_call.1} parent=1 // pred_fallthru
      _
    // Predicated region
    $region10: #{tpu_custom_call.1} parent=1 // pred_check
      _
    $region11: #{tpu_custom_call.1} parent=1 // pred_check_branch
      %47 = sbr.rel (0) target = $region13
    $region12: #{tpu_custom_call.1} parent=1 // pred_region
      %48 = dma.done [#allocation4], 256
    $region13: #{tpu_custom_call.1} parent=1 // pred_fallthru
      _
    // Predicated region
    $region14: #{tpu_custom_call.1} parent=1 // pred_check
      _
    $region15: #{tpu_custom_call.1} parent=1 // pred_check_branch
      %50 = sbr.rel (0) target = $region17
    $region16: #{tpu_custom_call.1} parent=1 // pred_region
      %51 = dma.done [#allocation7], 256
    $region17: #{tpu_custom_call.1} parent=1 // pred_fallthru
      _
    %s52 = sadd.s32 0, 0
    %p53 = scmp.lt.s32.totalorder %s52, 0
    %s54 = scalar_select %p53, %s52, 0
    %s55 = smul.u32 2, %s54
    %s56 = sadd.s32 0, 0
    %p57 = scmp.lt.s32.totalorder %s56, 0
    %s58 = scalar_select %p57, %s56, 0
    %s59 = smul.u32 2, %s58
    %p60 = scmp.eq.s32.totalorder 0, 0
    // Predicated region
    $region18: #{tpu_custom_call.1} parent=1 // pred_check
      %p61 = pneg %p60
    $region19: #{tpu_custom_call.1} parent=1 // pred_check_branch
      %63 = sbr.rel (%p61) target = $region21
    $region20: #{tpu_custom_call.1} parent=1 // pred_region
      %64 = vst [vmem:[#allocation2] sm:$0xff] 0.0
    $region21: #{tpu_custom_call.1} parent=1 // pred_fallthru
      _
    %v65 = vld [vmem:[#allocation3] sm:$0xff]
    %v66 = vld [vmem:[#allocation3 + $0x8] sm:$0xff]
    %v67 = vld [vmem:[#allocation6] sm:$0xff]
    %v68 = vld [vmem:[#allocation6 + $0x8] sm:$0xff]
    %v69 = vmax.f32 %v65, 1.0
    %v70 = vmax.f32 %v66, 1.0
    %v71 = vmax.f32 %v67, 1.0
    %v72 = vmax.f32 %v68, 1.0
    %v73 = vadd.f32 %v71, 1.0
    %v74 = vadd.f32 %v72, 1.0
    %v75 = vlog2.pop %v73
    %v76 = vmul.f32 %v75, 0.6931472
    %v77 = vlog2.pop %v74
    %v78 = vmul.f32 %v77, 0.6931472
    %v79 = vrcp.pop 0.6931472
    %v80 = vmul.f32 %v76, %v79
    %v81 = vmul.f32 %v78, %v79
    %v82 = vadd.f32 %v69, 1.0
    %v83 = vadd.f32 %v70, 1.0
    %v84 = vlog2.pop %v82
    %v85 = vmul.f32 %v84, 0.6931472
    %v86 = vlog2.pop %v83
    %v87 = vmul.f32 %v86, 0.6931472
    %v88 = vmul.f32 %v85, %v79
    %v89 = vmul.f32 %v87, %v79
    %v90 = vsub.f32 %v80, %v88
    %v91 = vsub.f32 %v81, %v89
    %v92 = vand.u32 2147483647, %v90
    %v93 = vand.u32 2147483647, %v91
    %v94 = vadd.f32 %v71, 2.0
    %v95 = vadd.f32 %v72, 2.0
    %v96 = vlog2.pop %v94
    %v97 = vmul.f32 %v96, 0.6931472
    %v98 = vlog2.pop %v95
    %v99 = vmul.f32 %v98, 0.6931472
    %v100 = vmul.f32 %v97, %v79
    %v101 = vmul.f32 %v99, %v79
    %v102 = vrcp.pop %v100
    %v103 = vmul.f32 %v92, %v102
    %v104 = vrcp.pop %v101
    %v105 = vmul.f32 %v93, %v104
    %v106 = vld [vmem:[#allocation2] sm:$0xff]
    %v107 = vadd.f32 %v103, %v105
    %v108 = vadd.f32 %v106, %v107
    %109 = vst [vmem:[#allocation2] sm:$0xff] %v108
    // Predicated region
    $region22: #{tpu_custom_call.1} parent=1 // pred_check
      %p110 = pneg %p60
    $region23: #{tpu_custom_call.1} parent=1 // pred_check_branch
      %112 = sbr.rel (%p110) target = $region25
    $region24: #{tpu_custom_call.1} parent=1 // pred_region
      %v113 = vld [vmem:[#allocation2] sm:$0xff]
      %114 = vst [vmem:[#allocation8] sm:$0xff] %v113
    $region25: #{tpu_custom_call.1} parent=1 // pred_fallthru
      _
    // Predicated region
    $region26: #{tpu_custom_call.1} parent=1 // pred_check
      _
    $region27: #{tpu_custom_call.1} parent=1 // pred_check_branch
      %116 = sbr.rel (0) target = $region29
    $region28: #{tpu_custom_call.1} parent=1 // pred_region
      %s118 = ssub.s32 128, 128
      %119 = vsyncadd [#allocation5], %s118
      %s121 = sshll.u32 [#allocation8], 4
      %s122 = int_to_ptr.vmem [resolvable:$true] %s121
      %124 = dma.vmem_to_hbm [thread:$0]  %s122, 128, %s2, [#allocation5]
    $region29: #{tpu_custom_call.1} parent=1 // pred_fallthru
      _
    // Predicated region
    $region30: #{tpu_custom_call.1} parent=1 // pred_check
      _
    $region31: #{tpu_custom_call.1} parent=1 // pred_check_branch
      %126 = sbr.rel (0) target = $region33
    $region32: #{tpu_custom_call.1} parent=1 // pred_region
      %127 = dma.done [#allocation5], 128
    $region33: #{tpu_custom_call.1} parent=1 // pred_fallthru
      _
    %128 = vsyncpa [#allocation4], 1
    %129 = vsyncpa [#allocation7], 1
    %130 = vsyncpa [#allocation5], 1

</llo_original>
